<compile_context>
chip_gen: v7x
topology: tpu7x:2x2x1
jax: 0.10.0
libtpu: 0.0.40
codegen_flags: <defaults>
</compile_context>

<pallas_src>
import functools
import math

import jax
import jax.numpy as jnp
from jax.experimental import pallas as pl
from jax.experimental.pallas import tpu as pltpu


def _round_up(x, m):
    return (x + m - 1) // m * m


def _adjacency_dtype():
    """int8 on v5e/v6e (integer-friendly MXU path), bf16 elsewhere (v7x has no
    integer MXU).  Both represent 0/1 adjacency values exactly."""
    try:
        kind = jax.devices()[0].device_kind.lower()
    except Exception:
        return jnp.bfloat16
    if "v5" in kind or "v6" in kind:
        return jnp.int8
    return jnp.bfloat16


def _vmem_limit_bytes():
    """Scoped-VMEM limit per generation (v5e/v6e: 128 MiB physical, v7x: 64 MiB)."""
    try:
        kind = jax.devices()[0].device_kind.lower()
    except Exception:
        return 64 * 1024 * 1024
    if "v7" in kind:
        return 56 * 1024 * 1024
    return 100 * 1024 * 1024


# --------------------------------------------------------------------------- #
# Kernel: one LightGCN propagation layer + residual, one (dst, src) grid step
# --------------------------------------------------------------------------- #
def gcn_layer_kernel(at_ref, x_ref, res_ref, inorm_ref, onorm_ref, coef_ref,
                     nextx_ref, newres_ref, acc_ref, *, tile_k, x_resident):
    """
    at_ref    : (TN, TK) tile of quantized A^T (int8/bf16), A^T[dst, src]
    x_ref     : (TK, Dp) streamed x tile  OR  (Np, Dp) fully-resident x
                (x already carries the src-side norm)
    res_ref   : (TN, Dp) running residual embedding (dst tile)
    inorm_ref : (TN, 1)  dst-side norm  clamp(in_deg, 1)^-0.5
    onorm_ref : (TN, 1)  src-side norm of the SAME nodes, pre-applied to the
                next layer's input in the finalize step
    coef_ref  : (1,) SMEM f32 scalar, 1 / (layer + 2)
    nextx_ref : (TN, Dp) next layer's (pre-normalized) input
    newres_ref: (TN, Dp) updated residual (aliased with res in HBM)
    acc_ref   : (TN, Dp) f32 VMEM accumulator, resident across the k axis
    """
    k = pl.program_id(1)

    @pl.when(k == 0)
    def _init():
        acc_ref[...] = jnp.zeros_like(acc_ref)

    if x_resident:
        start = pl.multiple_of(k * tile_k, tile_k)
        x = x_ref[pl.ds(start, tile_k), :]
    else:
        x = x_ref[...]

    # rst[dst] += sum_src A[src, dst] * x[src]  ==  (A^T tile) @ x
    # The quantized tile is widened to f32 in VMEM (cheap VPU convert); only the
    # narrow dtype ever crosses HBM.
    acc_ref[...] += jnp.dot(at_ref[...].astype(jnp.float32), x,
                            preferred_element_type=jnp.float32)

    @pl.when(k == pl.num_programs(1) - 1)
    def _finalize():
        rst = acc_ref[...] * inorm_ref[...]                 # dst-side norm
        newres_ref[...] = res_ref[...] + rst * coef_ref[0]  # residual add
        nextx_ref[...] = rst * onorm_ref[...]               # src-norm for next layer


def gcn_layer_step(at_q, x, res, in_norm, out_norm, coef, *,
                   tile_n, tile_k, x_resident, vmem_limit):
    """One GCN layer. Returns (next_x, new_res), both (Np, Dp) float32."""
    Np, Dp = x.shape
    grid = (Np // tile_n, Np // tile_k)   # (dst tiles [parallel], src tiles [reduction])

    if x_resident:
        # Whole feature matrix DMA'd once per layer and held resident in VMEM.
        x_spec = pl.BlockSpec((Np, Dp), lambda i, k: (0, 0))
    else:
        x_spec = pl.BlockSpec((tile_k, Dp), lambda i, k: (k, 0))

    kernel = functools.partial(gcn_layer_kernel, tile_k=tile_k,
                               x_resident=x_resident)

    next_x, new_res = pl.pallas_call(
        kernel,
        out_shape=(
            jax.ShapeDtypeStruct((Np, Dp), jnp.float32),
            jax.ShapeDtypeStruct((Np, Dp), jnp.float32),
        ),
        grid=grid,
        in_specs=[
            # A^T tile: the dominant HBM stream (quantized). If a profile shows
            # exposed DMA with small tile_k, add pipeline_mode=pl.Buffered(3).
            pl.BlockSpec((tile_n, tile_k), lambda i, k: (i, k)),
            x_spec,                                               # x (src features)
            pl.BlockSpec((tile_n, Dp), lambda i, k: (i, 0)),      # res (dst residual)
            pl.BlockSpec((tile_n, 1), lambda i, k: (i, 0)),       # in_norm (dst)
            pl.BlockSpec((tile_n, 1), lambda i, k: (i, 0)),       # out_norm (dst)
            pl.BlockSpec(memory_space=pltpu.MemorySpace.SMEM),    # coef scalar
        ],
        out_specs=(
            pl.BlockSpec((tile_n, Dp), lambda i, k: (i, 0)),      # next_x
            pl.BlockSpec((tile_n, Dp), lambda i, k: (i, 0)),      # new_res
        ),
        scratch_shapes=[pltpu.VMEM((tile_n, Dp), jnp.float32)],   # f32 accumulator
        input_output_aliases={2: 1},                              # res -> new_res
        compiler_params=pltpu.CompilerParams(
            dimension_semantics=("parallel", "arbitrary"),
            vmem_limit_bytes=vmem_limit,
        ),
    )(at_q, x, res, in_norm, out_norm, coef)
    return next_x, new_res


# --------------------------------------------------------------------------- #
# One-time graph preprocessing (outside the jitted forward)
# --------------------------------------------------------------------------- #
def prepare_graph(adj, *, tile_n=256, tile_k=2048):
    """Pad + transpose + quantize the adjacency and precompute degree norms.

    adj : (N, N) dense float adjacency with adj[src, dst] = 1.0 for src -> dst.
    Returns (at, in_norm, out_norm, n_nodes, tile_n, tile_k).
    """
    N = adj.shape[0]
    adj = jnp.asarray(adj, jnp.float32)

    n128 = _round_up(N, 128)
    tile_n = max(128, min(_round_up(tile_n, 128), n128))
    tile_k = max(128, min(_round_up(tile_k, 128), n128))
    Np = _round_up(N, math.lcm(tile_n, tile_k))

    a_dtype = _adjacency_dtype()
    # Transpose + quantize ONCE per graph so the kernel does a plain row-major
    # contraction rst = A^T @ x (no per-forward transpose, no per-tile XLU work).
    at = jnp.zeros((Np, Np), a_dtype).at[:N, :N].set(adj.T.astype(a_dtype))

    out_deg = jnp.maximum(jnp.sum(adj, axis=1), 1.0)   # out-degree (src side)
    in_deg = jnp.maximum(jnp.sum(adj, axis=0), 1.0)    # in-degree  (dst side)
    out_norm = jnp.zeros((Np, 1), jnp.float32).at[:N, 0].set(out_deg ** -0.5)
    in_norm = jnp.zeros((Np, 1), jnp.float32).at[:N, 0].set(in_deg ** -0.5)

    return at, in_norm, out_norm, N, tile_n, tile_k


# --------------------------------------------------------------------------- #
# MODEL.forward
# --------------------------------------------------------------------------- #
@functools.partial(jax.jit,
                   static_argnames=("n_nodes", "layer_num", "tile_n", "tile_k"))
def model_forward(at, in_norm, out_norm, user_emb, item_emb, *,
                  n_nodes, layer_num=1, tile_n=256, tile_k=2048):
    """Returns (user_embedding, item_embedding) as in MODEL.forward."""
    user_num, D = user_emb.shape
    N = n_nodes
    Np = at.shape[0]
    Dp = _round_up(D, 128)     # lane-dense feature dim -> unmasked vector stores

    node_f = jnp.concatenate([user_emb, item_emb], axis=0).astype(jnp.float32)
    res = jnp.zeros((Np, Dp), jnp.float32).at[:N, :D].set(node_f)
    # Layer-0 src-side norm applied once here; deeper layers get it folded into
    # the previous layer's in-kernel finalize.
    x = res * out_norm

    # Hold x fully resident in VMEM when it fits a small budget (DMA once/layer).
    x_resident = (Np * Dp * 4) <= (8 * 1024 * 1024)
    vmem_limit = _vmem_limit_bytes()

    for i in range(layer_num):
        coef = jnp.full((1,), 1.0 / (i + 2), jnp.float32)   # SMEM scalar input
        x, res = gcn_layer_step(at, x, res, in_norm, out_norm, coef,
                                tile_n=tile_n, tile_k=tile_k,
                                x_resident=x_resident, vmem_limit=vmem_limit)

    return res[:user_num, :D], res[user_num:N, :D]


def xavier_uniform(key, shape):
    fan_in, fan_out = shape[0], shape[1]
    bound = math.sqrt(6.0 / (fan_in + fan_out))
    return jax.random.uniform(key, shape, dtype=jnp.float32,
                              minval=-bound, maxval=bound)


if __name__ == "__main__":
    # Small but non-trivial: N = 256 nodes, D = 32, 2 layers.
    user_num, item_num, hide_dim, layer_num = 96, 160, 32, 2
    N = user_num + item_num

    key = jax.random.PRNGKey(0)
    k_u, k_i, k_g = jax.random.split(key, 3)

    # Deterministic xavier_uniform embeddings (matches nn.init.xavier_uniform_).
    user_emb = xavier_uniform(k_u, (user_num, hide_dim))
    item_emb = xavier_uniform(k_i, (item_num, hide_dim))

    # Deterministic bipartite user<->item graph with edges both ways: A[src, dst].
    ui = jax.random.bernoulli(k_g, p=0.1, shape=(user_num, item_num)).astype(jnp.float32)
    adj = jnp.zeros((N, N), dtype=jnp.float32)
    adj = adj.at[:user_num, user_num:].set(ui)
    adj = adj.at[user_num:, :user_num].set(ui.T)

    # One-time graph preprocessing (transpose + quantize + degree norms).
    at, in_norm, out_norm, n_nodes, tile_n, tile_k = prepare_graph(adj)

    u_out, i_out = model_forward(at, in_norm, out_norm, user_emb, item_emb,
                                 n_nodes=n_nodes, layer_num=layer_num,
                                 tile_n=tile_n, tile_k=tile_k)
    jax.block_until_ready((u_out, i_out))

    # Pure-JAX f32 reference of the same semantics.
    def ref_forward(adj, u, v, layers):
        res = jnp.concatenate([u, v], 0)
        emb = res
        for i in range(layers):
            out_deg = jnp.maximum(adj.sum(1, keepdims=True), 1.0)
            x = emb * out_deg ** -0.5
            rst = adj.T @ x
            in_deg = jnp.maximum(adj.sum(0), 1.0)[:, None]
            rst = rst * in_deg ** -0.5
            res = res + rst * (1.0 / (i + 2))
            emb = rst
        return res[:u.shape[0]], res[u.shape[0]:]

    ru, ri = ref_forward(adj, user_emb, item_emb, layer_num)
    assert jnp.allclose(u_out, ru, atol=1e-4, rtol=1e-4), "user embedding mismatch"
    assert jnp.allclose(i_out, ri, atol=1e-4, rtol=1e-4), "item embedding mismatch"

    print("KERNEL_OK")
</pallas_src>

<mosaic_0001>
module attributes {stable_mosaic.version = 11 : i64} {
  func.func @gcn_layer_kernel(%arg0: i32, %arg1: i32, %arg2: memref<256x256xbf16, #tpu.memory_space<vmem>>, %arg3: memref<256x128xf32, #tpu.memory_space<vmem>>, %arg4: memref<256x128xf32, #tpu.memory_space<vmem>>, %arg5: memref<256x1xf32, #tpu.memory_space<vmem>>, %arg6: memref<256x1xf32, #tpu.memory_space<vmem>>, %arg7: memref<1xf32, #tpu.memory_space<smem>>, %arg8: memref<256x128xf32, #tpu.memory_space<vmem>>, %arg9: memref<256x128xf32, #tpu.memory_space<vmem>>, %arg10: memref<256x128xf32, #tpu.memory_space<vmem>>) attributes {dimension_semantics = [#tpu.dimension_semantics<parallel>, #tpu.dimension_semantics<arbitrary>], iteration_bounds = array<i64: 1, 1>, scalar_prefetch = 0 : i64, scratch_operands = 1 : i64, tpu.core_type = #tpu.core_type<tc>, window_params = [{transform_indices = @transform_0, window_bounds = array<i64: 256, 256>}, {pipeline_mode = #tpu.pipeline_mode<synchronous>, transform_indices = @transform_1, window_bounds = array<i64: 256, 128>}, {transform_indices = @transform_2, window_bounds = array<i64: 256, 128>}, {transform_indices = @transform_3, window_bounds = array<i64: 256, 1>}, {transform_indices = @transform_4, window_bounds = array<i64: 256, 1>}, {transform_indices = @transform_5, window_bounds = array<i64: 1>}, {transform_indices = @transform_6, window_bounds = array<i64: 256, 128>}, {transform_indices = @transform_7, window_bounds = array<i64: 256, 128>}]} {
    %c0_i32 = arith.constant 0 : i32
    %0 = arith.cmpi eq, %arg1, %c0_i32 : i32
    %1 = arith.extui %0 : i1 to i32
    %c0_i32_0 = arith.constant 0 : i32
    %2 = arith.cmpi ne, %1, %c0_i32_0 : i32
    scf.if %2 {
      %cst_9 = arith.constant 0.000000e+00 : f32
      %16 = vector.broadcast %cst_9 : f32 to vector<256x128xf32>
      %c0_10 = arith.constant 0 : index
      %c0_11 = arith.constant 0 : index
      %17 = vector.load %arg10[%c0_10, %c0_11] : memref<256x128xf32, #tpu.memory_space<vmem>>, vector<256x128xf32>
      tpu.vector_store %arg10[%c0_10, %c0_11], %16 {strides = array<i32>} : memref<256x128xf32, #tpu.memory_space<vmem>>, vector<256x128xf32>,
    } else {
    }
    %c256_i32 = arith.constant 256 : i32
    %3 = arith.muli %arg1, %c256_i32 : i32
    %4 = tpu.assume_multiple %3, 256 : i32
    %5 = arith.index_cast %4 : i32 to index
    %c0 = arith.constant 0 : index
    %6 = vector.load %arg3[%5, %c0] : memref<256x128xf32, #tpu.memory_space<vmem>>, vector<256x128xf32>
    %c0_1 = arith.constant 0 : index
    %c0_2 = arith.constant 0 : index
    %7 = vector.load %arg10[%c0_1, %c0_2] : memref<256x128xf32, #tpu.memory_space<vmem>>, vector<256x128xf32>
    %c0_3 = arith.constant 0 : index
    %c0_4 = arith.constant 0 : index
    %8 = vector.load %arg2[%c0_3, %c0_4] : memref<256x256xbf16, #tpu.memory_space<vmem>>, vector<256x256xbf16>
    %9 = arith.extf %8 : vector<256x256xbf16> to vector<256x256xf32>
    %cst = arith.constant dense<0.000000e+00> : vector<256x128xf32>
    %10 = tpu.matmul %9, %6, %cst {dimension_numbers = #tpu.dot_dimension_numbers<[1], [0], [0], [1], [0, 0, 1, 1], [], []>} : vector<256x256xf32>, vector<256x128xf32>, vector<256x128xf32> -> vector<256x128xf32>
    %11 = arith.addf %7, %10 : vector<256x128xf32>
    %c0_5 = arith.constant 0 : index
    %c0_6 = arith.constant 0 : index
    %12 = vector.load %arg10[%c0_5, %c0_6] : memref<256x128xf32, #tpu.memory_space<vmem>>, vector<256x128xf32>
    tpu.vector_store %arg10[%c0_5, %c0_6], %11 {strides = array<i32>} : memref<256x128xf32, #tpu.memory_space<vmem>>, vector<256x128xf32>,
    %c0_i32_7 = arith.constant 0 : i32
    %13 = arith.cmpi eq, %arg1, %c0_i32_7 : i32
    %14 = arith.extui %13 : i1 to i32
    %c0_i32_8 = arith.constant 0 : i32
    %15 = arith.cmpi ne, %14, %c0_i32_8 : i32
    scf.if %15 {
      %c0_9 = arith.constant 0 : index
      %c0_10 = arith.constant 0 : index
      %16 = vector.load %arg10[%c0_9, %c0_10] : memref<256x128xf32, #tpu.memory_space<vmem>>, vector<256x128xf32>
      %c0_11 = arith.constant 0 : index
      %c0_12 = arith.constant 0 : index
      %17 = vector.load %arg5[%c0_11, %c0_12] : memref<256x1xf32, #tpu.memory_space<vmem>>, vector<256x1xf32>
      %18 = vector.broadcast %17 : vector<256x1xf32> to vector<256x128xf32>
      %19 = arith.mulf %16, %18 : vector<256x128xf32>
      %c0_13 = arith.constant 0 : index
      %c0_14 = arith.constant 0 : index
      %20 = vector.load %arg4[%c0_13, %c0_14] : memref<256x128xf32, #tpu.memory_space<vmem>>, vector<256x128xf32>
      %c0_15 = arith.constant 0 : index
      %21 = memref.load %arg7[%c0_15] : memref<1xf32, #tpu.memory_space<smem>>
      %22 = vector.broadcast %21 : f32 to vector<256x128xf32>
      %23 = arith.mulf %19, %22 : vector<256x128xf32>
      %24 = arith.addf %20, %23 : vector<256x128xf32>
      %c0_16 = arith.constant 0 : index
      %c0_17 = arith.constant 0 : index
      %25 = vector.load %arg9[%c0_16, %c0_17] : memref<256x128xf32, #tpu.memory_space<vmem>>, vector<256x128xf32>
      tpu.vector_store %arg9[%c0_16, %c0_17], %24 {strides = array<i32>} : memref<256x128xf32, #tpu.memory_space<vmem>>, vector<256x128xf32>,
      %c0_18 = arith.constant 0 : index
      %c0_19 = arith.constant 0 : index
      %26 = vector.load %arg6[%c0_18, %c0_19] : memref<256x1xf32, #tpu.memory_space<vmem>>, vector<256x1xf32>
      %27 = vector.broadcast %26 : vector<256x1xf32> to vector<256x128xf32>
      %28 = arith.mulf %19, %27 : vector<256x128xf32>
      %c0_20 = arith.constant 0 : index
      %c0_21 = arith.constant 0 : index
      %29 = vector.load %arg8[%c0_20, %c0_21] : memref<256x128xf32, #tpu.memory_space<vmem>>, vector<256x128xf32>
      tpu.vector_store %arg8[%c0_20, %c0_21], %28 {strides = array<i32>} : memref<256x128xf32, #tpu.memory_space<vmem>>, vector<256x128xf32>,
    } else {
    }
    return
  }
  func.func @transform_0(%arg0: i32, %arg1: i32) -> (i32, i32) {
    %c0_i32 = arith.constant 0 : i32
    return %arg0, %arg1 : i32, i32
  }
  func.func @transform_1(%arg0: i32, %arg1: i32) -> (i32, i32) {
    %c0_i32 = arith.constant 0 : i32
    %c0_i32_0 = arith.constant 0 : i32
    %c0_i32_1 = arith.constant 0 : i32
    return %c0_i32, %c0_i32_0 : i32, i32
  }
  func.func @transform_2(%arg0: i32, %arg1: i32) -> (i32, i32) {
    %c0_i32 = arith.constant 0 : i32
    %c0_i32_0 = arith.constant 0 : i32
    return %arg0, %c0_i32 : i32, i32
  }
  func.func @transform_3(%arg0: i32, %arg1: i32) -> (i32, i32) {
    %c0_i32 = arith.constant 0 : i32
    %c0_i32_0 = arith.constant 0 : i32
    return %arg0, %c0_i32 : i32, i32
  }
  func.func @transform_4(%arg0: i32, %arg1: i32) -> (i32, i32) {
    %c0_i32 = arith.constant 0 : i32
    %c0_i32_0 = arith.constant 0 : i32
    return %arg0, %c0_i32 : i32, i32
  }
  func.func @transform_5(%arg0: i32, %arg1: i32) -> i32 {
    %c0_i32 = arith.constant 0 : i32
    %c0_i32_0 = arith.constant 0 : i32
    return %c0_i32 : i32
  }
  func.func @transform_6(%arg0: i32, %arg1: i32) -> (i32, i32) {
    %c0_i32 = arith.constant 0 : i32
    %c0_i32_0 = arith.constant 0 : i32
    return %arg0, %c0_i32 : i32, i32
  }
  func.func @transform_7(%arg0: i32, %arg1: i32) -> (i32, i32) {
    %c0_i32 = arith.constant 0 : i32
    %c0_i32_0 = arith.constant 0 : i32
    return %arg0, %c0_i32 : i32, i32
  }
}

</mosaic_0001>

<llo_original>
// kernel: model_forward.2
$region0: #{model_forward.2}
  #allocation0 [shape = 'u32[]', space=smem, size = 0x4, offset = 0x4, fixed_abs, tag = 'smem constant byte address 0x4 - core index']
  #allocation1 [shape = 'u32[144,128]{1,0:T(1,128)}', space=vmem, size = 0x12000, scoped, tag = 'internal scratch']
  #allocation2 [shape = 'f32[256,128]{1,0:T(8,128)}', space=vmem, size = 0x20000, scoped, tag = 'scratch operand']
  #allocation3 [shape = 'f32[1]{0:T(128)S(6)}', space=smem, size = 0x200, scoped, tag = 'scoped memory for model_forward.2']
  %s0 = inlined_call_operand.hbm [shape: bf16[256,256], index: 0, kind: input, shape index: {}]
  %s1 = inlined_call_operand.hbm [shape: f32[256,128], index: 1, kind: input, shape index: {}]
  %s2 = inlined_call_operand.hbm [shape: f32[256,128], index: 2, kind: input, shape index: {}, may-alias: {2,7}]
  %s3 = inlined_call_operand.hbm [shape: f32[256,1], index: 3, kind: input, shape index: {}]
  %s4 = inlined_call_operand.hbm [shape: f32[256,1], index: 4, kind: input, shape index: {}]
  %s5 = inlined_call_operand.<no memory space> [shape: f32[1], index: 5, kind: input, shape index: {}]
  %s6 = inlined_call_operand.hbm [shape: f32[256,128], index: 6, kind: output, shape index: {0}]
  %s7 = inlined_call_operand.hbm [shape: f32[256,128], index: 7, kind: output, shape index: {1}, may-alias: {2,7}]
  %8 = xla_tuple %s6, %s7
  %s9 = sld [smem:[#allocation0]]
  $region70: #{model_forward.2} parent=0
    _
  %s11 = ssub.s32 1, %s9
  %s12 = scalar_select 0, %s11, %s9
  %13 = sst [smem:[#allocation3]] %s5
  $region1: #{model_forward.2} parent=0
    #allocation4 [shape = 'u8[131072]{0}', space=vmem, size = 0x20000, scoped, tag = 'input window, operand 0, single buffered']
    #allocation5 [shape = 's32[1]{0}', space=sflag, size = 0x4, scoped, tag = 'scoped memory for model_forward.2']
    #allocation6 [shape = 's32[1]{0}', space=sflag, size = 0x4, scoped, tag = 'scoped memory for model_forward.2']
    #allocation7 [shape = 'u8[131072]{0}', space=vmem, size = 0x20000, scoped, tag = 'input window, operand 1, single buffered']
    #allocation8 [shape = 's32[1]{0}', space=sflag, size = 0x4, scoped, tag = 'scoped memory for model_forward.2']
    #allocation9 [shape = 'u8[131072]{0}', space=vmem, size = 0x20000, scoped, tag = 'input window, operand 2, single buffered']
    #allocation10 [shape = 'u8[131072]{0}', space=vmem, size = 0x20000, scoped, tag = 'input window, operand 3, single buffered']
    #allocation11 [shape = 's32[1]{0}', space=sflag, size = 0x4, scoped, tag = 'scoped memory for model_forward.2']
    #allocation12 [shape = 'u8[131072]{0}', space=vmem, size = 0x20000, scoped, tag = 'input window, operand 4, single buffered']
    #allocation13 [shape = 'u8[131072]{0}', space=vmem, size = 0x20000, scoped, tag = 'output window, operand 0, single buffered']
    #allocation14 [shape = 'u8[131072]{0}', space=vmem, size = 0x20000, scoped, tag = 'output window, operand 1, single buffered']
    #allocation15 [shape = 's32[1]{0}', space=sflag, size = 0x4, scoped, tag = 'scoped memory for model_forward.2']
    %14 = vsyncpa [#allocation5], 0
    %15 = vsyncpa [#allocation8], 0
    %16 = vsyncpa [#allocation11], 0
    %17 = vsyncpa [#allocation6], 0
    %18 = vsyncpa [#allocation15], 0
    // Predicated region
    $region2: #{model_forward.2} parent=1 // pred_check
      _
    $region3: #{model_forward.2} parent=1 // pred_check_branch
      %20 = sbr.rel (0) target = $region5
    $region4: #{model_forward.2} parent=1 // pred_region
      %s22 = ssub.s32 4096, 4096
      %23 = vsyncadd [#allocation5], %s22
      %s24 = sshll.u32 [#allocation4], 4
      %s25 = int_to_ptr.vmem [resolvable:$true] %s24
      %30 = dma.hbm_to_vmem [thread:$0]  %s0, 4096, %s25, [#allocation5], 128, 128, 8
    $region5: #{model_forward.2} parent=1 // pred_fallthru
      _
    // Predicated region
    $region6: #{model_forward.2} parent=1 // pred_check
      _
    $region7: #{model_forward.2} parent=1 // pred_check_branch
      %32 = sbr.rel (0) target = $region9
    $region8: #{model_forward.2} parent=1 // pred_region
      %s34 = ssub.s32 4096, 4096
      %35 = vsyncadd [#allocation8], %s34
      %s36 = sshll.u32 [#allocation7], 4
      %s37 = int_to_ptr.vmem [resolvable:$true] %s36
      %42 = dma.hbm_to_vmem [thread:$0]  %s1, 4096, %s37, [#allocation8], 128, 128, 8
    $region9: #{model_forward.2} parent=1 // pred_fallthru
      _
    // Predicated region
    $region10: #{model_forward.2} parent=1 // pred_check
      _
    $region11: #{model_forward.2} parent=1 // pred_check_branch
      %44 = sbr.rel (0) target = $region13
    $region12: #{model_forward.2} parent=1 // pred_region
      %s46 = ssub.s32 4096, 4096
      %47 = vsyncadd [#allocation8], %s46
      %s48 = sshll.u32 [#allocation9], 4
      %s49 = int_to_ptr.vmem [resolvable:$true] %s48
      %54 = dma.hbm_to_vmem [thread:$0]  %s2, 4096, %s49, [#allocation8], 128, 128, 8
    $region13: #{model_forward.2} parent=1 // pred_fallthru
      _
    // Predicated region
    $region14: #{model_forward.2} parent=1 // pred_check
      _
    $region15: #{model_forward.2} parent=1 // pred_check_branch
      %56 = sbr.rel (0) target = $region17
    $region16: #{model_forward.2} parent=1 // pred_region
      %s58 = ssub.s32 4096, 4096
      %59 = vsyncadd [#allocation11], %s58
      %s60 = sshll.u32 [#allocation10], 4
      %s61 = int_to_ptr.vmem [resolvable:$true] %s60
      %66 = dma.hbm_to_vmem [thread:$0]  %s3, 4096, %s61, [#allocation11], 128, 128, 8
    $region17: #{model_forward.2} parent=1 // pred_fallthru
      _
    // Predicated region
    $region18: #{model_forward.2} parent=1 // pred_check
      _
    $region19: #{model_forward.2} parent=1 // pred_check_branch
      %68 = sbr.rel (0) target = $region21
    $region20: #{model_forward.2} parent=1 // pred_region
      %s70 = ssub.s32 4096, 4096
      %71 = vsyncadd [#allocation11], %s70
      %s72 = sshll.u32 [#allocation12], 4
      %s73 = int_to_ptr.vmem [resolvable:$true] %s72
      %78 = dma.hbm_to_vmem [thread:$0]  %s4, 4096, %s73, [#allocation11], 128, 128, 8
    $region21: #{model_forward.2} parent=1 // pred_fallthru
      _
    // Predicated region
    $region22: #{model_forward.2} parent=1 // pred_check
      _
    $region23: #{model_forward.2} parent=1 // pred_check_branch
      %80 = sbr.rel (0) target = $region25
    $region24: #{model_forward.2} parent=1 // pred_region
      _
    $region25: #{model_forward.2} parent=1 // pred_fallthru
      _
    // Predicated region
    $region26: #{model_forward.2} parent=1 // pred_check
      _
    $region27: #{model_forward.2} parent=1 // pred_check_branch
      %82 = sbr.rel (0) target = $region29
    $region28: #{model_forward.2} parent=1 // pred_region
      %83 = dma.done [#allocation5], 4096
    $region29: #{model_forward.2} parent=1 // pred_fallthru
      _
    // Predicated region
    $region30: #{model_forward.2} parent=1 // pred_check
      _
    $region31: #{model_forward.2} parent=1 // pred_check_branch
      %85 = sbr.rel (0) target = $region33
    $region32: #{model_forward.2} parent=1 // pred_region
      %86 = dma.done [#allocation8], 4096
    $region33: #{model_forward.2} parent=1 // pred_fallthru
      _
    // Predicated region
    $region34: #{model_forward.2} parent=1 // pred_check
      _
    $region35: #{model_forward.2} parent=1 // pred_check_branch
      %88 = sbr.rel (0) target = $region37
    $region36: #{model_forward.2} parent=1 // pred_region
      %89 = dma.done [#allocation8], 4096
    $region37: #{model_forward.2} parent=1 // pred_fallthru
      _
    // Predicated region
    $region38: #{model_forward.2} parent=1 // pred_check
      _
    $region39: #{model_forward.2} parent=1 // pred_check_branch
      %91 = sbr.rel (0) target = $region41
    $region40: #{model_forward.2} parent=1 // pred_region
      %92 = dma.done [#allocation11], 4096
    $region41: #{model_forward.2} parent=1 // pred_fallthru
      _
    // Predicated region
    $region42: #{model_forward.2} parent=1 // pred_check
      _
    $region43: #{model_forward.2} parent=1 // pred_check_branch
      %94 = sbr.rel (0) target = $region45
    $region44: #{model_forward.2} parent=1 // pred_region
      %95 = dma.done [#allocation11], 4096
    $region45: #{model_forward.2} parent=1 // pred_fallthru
      _
    %p96 = scmp.eq.s32.totalorder 0, 0
    // Predicated region
    $region46: #{model_forward.2} parent=1 // pred_check
      %p97 = pneg %p96
    $region47: #{model_forward.2} parent=1 // pred_check_branch
      %99 = sbr.rel (%p97) target = $region49
    $region48: #{model_forward.2} parent=1 // pred_region
      %100 = vst [vmem:[#allocation2] sm:$0xff] 0.0
      %101 = vst [vmem:[#allocation2 + $0x8] sm:$0xff] 0.0
      %102 = vst [vmem:[#allocation2 + $0x10] sm:$0xff] 0.0
      %103 = vst [vmem:[#allocation2 + $0x18] sm:$0xff] 0.0
      %104 = vst [vmem:[#allocation2 + $0x20] sm:$0xff] 0.0
      %105 = vst [vmem:[#allocation2 + $0x28] sm:$0xff] 0.0
      %106 = vst [vmem:[#allocation2 + $0x30] sm:$0xff] 0.0
      %107 = vst [vmem:[#allocation2 + $0x38] sm:$0xff] 0.0
      %108 = vst [vmem:[#allocation2 + $0x40] sm:$0xff] 0.0
      %109 = vst [vmem:[#allocation2 + $0x48] sm:$0xff] 0.0
      %110 = vst [vmem:[#allocation2 + $0x50] sm:$0xff] 0.0
      %111 = vst [vmem:[#allocation2 + $0x58] sm:$0xff] 0.0
      %112 = vst [vmem:[#allocation2 + $0x60] sm:$0xff] 0.0
      %113 = vst [vmem:[#allocation2 + $0x68] sm:$0xff] 0.0
      %114 = vst [vmem:[#allocation2 + $0x70] sm:$0xff] 0.0
      %115 = vst [vmem:[#allocation2 + $0x78] sm:$0xff] 0.0
      %116 = vst [vmem:[#allocation2 + $0x80] sm:$0xff] 0.0
      %117 = vst [vmem:[#allocation2 + $0x88] sm:$0xff] 0.0
      %118 = vst [vmem:[#allocation2 + $0x90] sm:$0xff] 0.0
      %119 = vst [vmem:[#allocation2 + $0x98] sm:$0xff] 0.0
      %120 = vst [vmem:[#allocation2 + $0xa0] sm:$0xff] 0.0
      %121 = vst [vmem:[#allocation2 + $0xa8] sm:$0xff] 0.0
      %122 = vst [vmem:[#allocation2 + $0xb0] sm:$0xff] 0.0
      %123 = vst [vmem:[#allocation2 + $0xb8] sm:$0xff] 0.0
      %124 = vst [vmem:[#allocation2 + $0xc0] sm:$0xff] 0.0
      %125 = vst [vmem:[#allocation2 + $0xc8] sm:$0xff] 0.0
      %126 = vst [vmem:[#allocation2 + $0xd0] sm:$0xff] 0.0
      %127 = vst [vmem:[#allocation2 + $0xd8] sm:$0xff] 0.0
      %128 = vst [vmem:[#allocation2 + $0xe0] sm:$0xff] 0.0
      %129 = vst [vmem:[#allocation2 + $0xe8] sm:$0xff] 0.0
      %130 = vst [vmem:[#allocation2 + $0xf0] sm:$0xff] 0.0
      %131 = vst [vmem:[#allocation2 + $0xf8] sm:$0xff] 0.0
    $region49: #{model_forward.2} parent=1 // pred_fallthru
      _
    %s132 = smul.u32 0, 256
    %s133 = scalar_lea.vmem [#allocation7], %s132
    %v134 = vld [vmem:[%s133] sm:$0xff]
    %v135 = vld [vmem:[%s133 + $0x8] sm:$0xff]
    %v136 = vld [vmem:[%s133 + $0x10] sm:$0xff]
    %v137 = vld [vmem:[%s133 + $0x18] sm:$0xff]
    %v138 = vld [vmem:[%s133 + $0x20] sm:$0xff]
    %v139 = vld [vmem:[%s133 + $0x28] sm:$0xff]
    %v140 = vld [vmem:[%s133 + $0x30] sm:$0xff]
    %v141 = vld [vmem:[%s133 + $0x38] sm:$0xff]
    %v142 = vld [vmem:[%s133 + $0x40] sm:$0xff]
    %v143 = vld [vmem:[%s133 + $0x48] sm:$0xff]
    %v144 = vld [vmem:[%s133 + $0x50] sm:$0xff]
    %v145 = vld [vmem:[%s133 + $0x58] sm:$0xff]
    %v146 = vld [vmem:[%s133 + $0x60] sm:$0xff]
    %v147 = vld [vmem:[%s133 + $0x68] sm:$0xff]
    %v148 = vld [vmem:[%s133 + $0x70] sm:$0xff]
    %v149 = vld [vmem:[%s133 + $0x78] sm:$0xff]
    %v150 = vld [vmem:[%s133 + $0x80] sm:$0xff]
    %v151 = vld [vmem:[%s133 + $0x88] sm:$0xff]
    %v152 = vld [vmem:[%s133 + $0x90] sm:$0xff]
    %v153 = vld [vmem:[%s133 + $0x98] sm:$0xff]
    %v154 = vld [vmem:[%s133 + $0xa0] sm:$0xff]
    %v155 = vld [vmem:[%s133 + $0xa8] sm:$0xff]
    %v156 = vld [vmem:[%s133 + $0xb0] sm:$0xff]
    %v157 = vld [vmem:[%s133 + $0xb8] sm:$0xff]
    %v158 = vld [vmem:[%s133 + $0xc0] sm:$0xff]
    %v159 = vld [vmem:[%s133 + $0xc8] sm:$0xff]
    %v160 = vld [vmem:[%s133 + $0xd0] sm:$0xff]
    %v161 = vld [vmem:[%s133 + $0xd8] sm:$0xff]
    %v162 = vld [vmem:[%s133 + $0xe0] sm:$0xff]
    %v163 = vld [vmem:[%s133 + $0xe8] sm:$0xff]
    %v164 = vld [vmem:[%s133 + $0xf0] sm:$0xff]
    %v165 = vld [vmem:[%s133 + $0xf8] sm:$0xff]
    %v166 = vld [vmem:[#allocation2] sm:$0xff]
    %v167 = vld [vmem:[#allocation2 + $0x8] sm:$0xff]
    %v168 = vld [vmem:[#allocation2 + $0x10] sm:$0xff]
    %v169 = vld [vmem:[#allocation2 + $0x18] sm:$0xff]
    %v170 = vld [vmem:[#allocation2 + $0x20] sm:$0xff]
    %v171 = vld [vmem:[#allocation2 + $0x28] sm:$0xff]
    %v172 = vld [vmem:[#allocation2 + $0x30] sm:$0xff]
    %v173 = vld [vmem:[#allocation2 + $0x38] sm:$0xff]
    %v174 = vld [vmem:[#allocation2 + $0x40] sm:$0xff]
    %v175 = vld [vmem:[#allocation2 + $0x48] sm:$0xff]
    %v176 = vld [vmem:[#allocation2 + $0x50] sm:$0xff]
    %v177 = vld [vmem:[#allocation2 + $0x58] sm:$0xff]
    %v178 = vld [vmem:[#allocation2 + $0x60] sm:$0xff]
    %v179 = vld [vmem:[#allocation2 + $0x68] sm:$0xff]
    %v180 = vld [vmem:[#allocation2 + $0x70] sm:$0xff]
    %v181 = vld [vmem:[#allocation2 + $0x78] sm:$0xff]
    %v182 = vld [vmem:[#allocation2 + $0x80] sm:$0xff]
    %v183 = vld [vmem:[#allocation2 + $0x88] sm:$0xff]
    %v184 = vld [vmem:[#allocation2 + $0x90] sm:$0xff]
    %v185 = vld [vmem:[#allocation2 + $0x98] sm:$0xff]
    %v186 = vld [vmem:[#allocation2 + $0xa0] sm:$0xff]
    %v187 = vld [vmem:[#allocation2 + $0xa8] sm:$0xff]
    %v188 = vld [vmem:[#allocation2 + $0xb0] sm:$0xff]
    %v189 = vld [vmem:[#allocation2 + $0xb8] sm:$0xff]
    %v190 = vld [vmem:[#allocation2 + $0xc0] sm:$0xff]
    %v191 = vld [vmem:[#allocation2 + $0xc8] sm:$0xff]
    %v192 = vld [vmem:[#allocation2 + $0xd0] sm:$0xff]
    %v193 = vld [vmem:[#allocation2 + $0xd8] sm:$0xff]
    %v194 = vld [vmem:[#allocation2 + $0xe0] sm:$0xff]
    %v195 = vld [vmem:[#allocation2 + $0xe8] sm:$0xff]
    %v196 = vld [vmem:[#allocation2 + $0xf0] sm:$0xff]
    %v197 = vld [vmem:[#allocation2 + $0xf8] sm:$0xff]
    %v198 = vld [vmem:[#allocation4] sm:$0xff]
    %v199 = vld [vmem:[#allocation4 + $0x8] sm:$0xff]
    %v200 = vld [vmem:[#allocation4 + $0x10] sm:$0xff]
    %v201 = vld [vmem:[#allocation4 + $0x18] sm:$0xff]
    %v202 = vld [vmem:[#allocation4 + $0x20] sm:$0xff]
    %v203 = vld [vmem:[#allocation4 + $0x28] sm:$0xff]
    %v204 = vld [vmem:[#allocation4 + $0x30] sm:$0xff]
    %v205 = vld [vmem:[#allocation4 + $0x38] sm:$0xff]
    %v206 = vld [vmem:[#allocation4 + $0x40] sm:$0xff]
    %v207 = vld [vmem:[#allocation4 + $0x48] sm:$0xff]
    %v208 = vld [vmem:[#allocation4 + $0x50] sm:$0xff]
    %v209 = vld [vmem:[#allocation4 + $0x58] sm:$0xff]
    %v210 = vld [vmem:[#allocation4 + $0x60] sm:$0xff]
    %v211 = vld [vmem:[#allocation4 + $0x68] sm:$0xff]
    %v212 = vld [vmem:[#allocation4 + $0x70] sm:$0xff]
    %v213 = vld [vmem:[#allocation4 + $0x78] sm:$0xff]
    %v214 = vld [vmem:[#allocation4 + $0x80] sm:$0xff]
    %v215 = vld [vmem:[#allocation4 + $0x88] sm:$0xff]
    %v216 = vld [vmem:[#allocation4 + $0x90] sm:$0xff]
    %v217 = vld [vmem:[#allocation4 + $0x98] sm:$0xff]
    %v218 = vld [vmem:[#allocation4 + $0xa0] sm:$0xff]
    %v219 = vld [vmem:[#allocation4 + $0xa8] sm:$0xff]
    %v220 = vld [vmem:[#allocation4 + $0xb0] sm:$0xff]
    %v221 = vld [vmem:[#allocation4 + $0xb8] sm:$0xff]
    %v222 = vld [vmem:[#allocation4 + $0xc0] sm:$0xff]
    %v223 = vld [vmem:[#allocation4 + $0xc8] sm:$0xff]
    %v224 = vld [vmem:[#allocation4 + $0xd0] sm:$0xff]
    %v225 = vld [vmem:[#allocation4 + $0xd8] sm:$0xff]
    %v226 = vld [vmem:[#allocation4 + $0xe0] sm:$0xff]
    %v227 = vld [vmem:[#allocation4 + $0xe8] sm:$0xff]
    %v228 = vld [vmem:[#allocation4 + $0xf0] sm:$0xff]
    %v229 = vld [vmem:[#allocation4 + $0xf8] sm:$0xff]
    %v230 = vunpack.c.l.bf16 %v198
    %v231 = vunpack.c.h.bf16 %v198
    %v232 = vunpack.c.l.bf16 %v199
    %v233 = vunpack.c.h.bf16 %v199
    %v234 = vunpack.c.l.bf16 %v200
    %v235 = vunpack.c.h.bf16 %v200
    %v236 = vunpack.c.l.bf16 %v201
    %v237 = vunpack.c.h.bf16 %v201
    %v238 = vunpack.c.l.bf16 %v202
    %v239 = vunpack.c.h.bf16 %v202
    %v240 = vunpack.c.l.bf16 %v203
    %v241 = vunpack.c.h.bf16 %v203
    %v242 = vunpack.c.l.bf16 %v204
    %v243 = vunpack.c.h.bf16 %v204
    %v244 = vunpack.c.l.bf16 %v205
    %v245 = vunpack.c.h.bf16 %v205
    %v246 = vunpack.c.l.bf16 %v206
    %v247 = vunpack.c.h.bf16 %v206
    %v248 = vunpack.c.l.bf16 %v207
    %v249 = vunpack.c.h.bf16 %v207
    %v250 = vunpack.c.l.bf16 %v208
    %v251 = vunpack.c.h.bf16 %v208
    %v252 = vunpack.c.l.bf16 %v209
    %v253 = vunpack.c.h.bf16 %v209
    %v254 = vunpack.c.l.bf16 %v210
    %v255 = vunpack.c.h.bf16 %v210
    %v256 = vunpack.c.l.bf16 %v211
    %v257 = vunpack.c.h.bf16 %v211
    %v258 = vunpack.c.l.bf16 %v212
    %v259 = vunpack.c.h.bf16 %v212
    %v260 = vunpack.c.l.bf16 %v213
    %v261 = vunpack.c.h.bf16 %v213
    %v262 = vunpack.c.l.bf16 %v214
    %v263 = vunpack.c.h.bf16 %v214
    %v264 = vunpack.c.l.bf16 %v215
    %v265 = vunpack.c.h.bf16 %v215
    %v266 = vunpack.c.l.bf16 %v216
    %v267 = vunpack.c.h.bf16 %v216
    %v268 = vunpack.c.l.bf16 %v217
    %v269 = vunpack.c.h.bf16 %v217
    %v270 = vunpack.c.l.bf16 %v218
    %v271 = vunpack.c.h.bf16 %v218
    %v272 = vunpack.c.l.bf16 %v219
    %v273 = vunpack.c.h.bf16 %v219
    %v274 = vunpack.c.l.bf16 %v220
    %v275 = vunpack.c.h.bf16 %v220
    %v276 = vunpack.c.l.bf16 %v221
    %v277 = vunpack.c.h.bf16 %v221
    %v278 = vunpack.c.l.bf16 %v222
    %v279 = vunpack.c.h.bf16 %v222
    %v280 = vunpack.c.l.bf16 %v223
    %v281 = vunpack.c.h.bf16 %v223
    %v282 = vunpack.c.l.bf16 %v224
    %v283 = vunpack.c.h.bf16 %v224
    %v284 = vunpack.c.l.bf16 %v225
    %v285 = vunpack.c.h.bf16 %v225
    %v286 = vunpack.c.l.bf16 %v226
    %v287 = vunpack.c.h.bf16 %v226
    %v288 = vunpack.c.l.bf16 %v227
    %v289 = vunpack.c.h.bf16 %v227
    %v290 = vunpack.c.l.bf16 %v228
    %v291 = vunpack.c.h.bf16 %v228
    %v292 = vunpack.c.l.bf16 %v229
    %v293 = vunpack.c.h.bf16 %v229
    %294 = vmatprep.subr.mxu0 0.0
    %295 = vmatpush1.msra.mxu0 %v134
    %296 = vmatprep.subr.mxu0 0.0
    %297 = vmatpush1.msra.mxu0 %v135
    %298 = vmatprep.subr.mxu0 0.0
    %299 = vmatpush1.msra.mxu0 %v136
    %300 = vmatprep.subr.mxu0 0.0
    %301 = vmatpush1.msra.mxu0 %v137
    %302 = vmatprep.subr.mxu0 0.0
    %303 = vmatpush1.msra.mxu0 %v138
    %304 = vmatprep.subr.mxu0 0.0
    %305 = vmatpush1.msra.mxu0 %v139
    %306 = vmatprep.subr.mxu0 0.0
    %307 = vmatpush1.msra.mxu0 %v140
    %308 = vmatprep.subr.mxu0 0.0
    %309 = vmatpush1.msra.mxu0 %v141
    %310 = vmatprep.subr.mxu0 0.0
    %311 = vmatpush1.msra.mxu0 %v142
    %312 = vmatprep.subr.mxu0 0.0
    %313 = vmatpush1.msra.mxu0 %v143
    %314 = vmatprep.subr.mxu0 0.0
    %315 = vmatpush1.msra.mxu0 %v144
    %316 = vmatprep.subr.mxu0 0.0
    %317 = vmatpush1.msra.mxu0 %v145
    %318 = vmatprep.subr.mxu0 0.0
    %319 = vmatpush1.msra.mxu0 %v146
    %320 = vmatprep.subr.mxu0 0.0
    %321 = vmatpush1.msra.mxu0 %v147
    %322 = vmatprep.subr.mxu0 0.0
    %323 = vmatpush1.msra.mxu0 %v148
    %324 = vmatprep.subr.mxu0 0.0
    %325 = vmatpush1.msra.mxu0 %v149
    %326 = vmatprep.subr.mxu0 0.0
    %327 = vmatpush1.msra.mxu0 %v150
    %328 = vmatprep.subr.mxu0 0.0
    %329 = vmatpush1.msra.mxu0 %v151
    %330 = vmatprep.subr.mxu0 0.0
    %331 = vmatpush1.msra.mxu0 %v152
    %332 = vmatprep.subr.mxu0 0.0
    %333 = vmatpush1.msra.mxu0 %v153
    %334 = vmatprep.subr.mxu0 0.0
    %335 = vmatpush1.msra.mxu0 %v154
    %336 = vmatprep.subr.mxu0 0.0
    %337 = vmatpush1.msra.mxu0 %v155
    %338 = vmatprep.subr.mxu0 0.0
    %339 = vmatpush1.msra.mxu0 %v156
    %340 = vmatprep.subr.mxu0 0.0
    %341 = vmatpush1.msra.mxu0 %v157
    %342 = vmatprep.subr.mxu0 0.0
    %343 = vmatpush1.msra.mxu0 %v158
    %344 = vmatprep.subr.mxu0 0.0
    %345 = vmatpush1.msra.mxu0 %v159
    %346 = vmatprep.subr.mxu0 0.0
    %347 = vmatpush1.msra.mxu0 %v160
    %348 = vmatprep.subr.mxu0 0.0
    %349 = vmatpush1.msra.mxu0 %v161
    %350 = vmatprep.subr.mxu0 0.0
    %351 = vmatpush1.msra.mxu0 %v162
    %352 = vmatprep.subr.mxu0 0.0
    %353 = vmatpush1.msra.mxu0 %v163
    %354 = vmatprep.subr.mxu0 0.0
    %355 = vmatpush1.msra.mxu0 %v164
    %356 = vmatprep.subr.mxu0 0.0
    %357 = vmatpush1.msra.mxu0 %v165
    %358 = vmatprep.mubr.f32.mxu0 %v231
    %359 = vmatmul.mubr.f32.gmra.mrb[0].mxu0 %v230
    %v360 = vpop.f32.mrb[0].mxu0
    %v361 = vadd.f32 0.0, %v360
    %v362 = vpop.f32.mrb[0].mxu0
    %363 = vmatprep.mubr.f32.mxu0 %v233
    %364 = vmatmul.mubr.f32.gmra.mrb[0].mxu0 %v232
    %v365 = vpop.f32.mrb[0].mxu0
    %v366 = vadd.f32 0.0, %v365
    %v367 = vpop.f32.mrb[0].mxu0
    %368 = vmatprep.mubr.f32.mxu0 %v235
    %369 = vmatmul.mubr.f32.gmra.mrb[0].mxu0 %v234
    %v370 = vpop.f32.mrb[0].mxu0
    %v371 = vadd.f32 0.0, %v370
    %v372 = vpop.f32.mrb[0].mxu0
    %373 = vmatprep.mubr.f32.mxu0 %v237
    %374 = vmatmul.mubr.f32.gmra.mrb[0].mxu0 %v236
    %v375 = vpop.f32.mrb[0].mxu0
    %v376 = vadd.f32 0.0, %v375
    %v377 = vpop.f32.mrb[0].mxu0
    %378 = vmatprep.mubr.f32.mxu0 %v239
    %379 = vmatmul.mubr.f32.gmra.mrb[0].mxu0 %v238
    %v380 = vpop.f32.mrb[0].mxu0
    %v381 = vadd.f32 0.0, %v380
    %v382 = vpop.f32.mrb[0].mxu0
    %383 = vmatprep.mubr.f32.mxu0 %v241
    %384 = vmatmul.mubr.f32.gmra.mrb[0].mxu0 %v240
    %v385 = vpop.f32.mrb[0].mxu0
    %v386 = vadd.f32 0.0, %v385
    %v387 = vpop.f32.mrb[0].mxu0
    %388 = vmatprep.mubr.f32.mxu0 %v243
    %389 = vmatmul.mubr.f32.gmra.mrb[0].mxu0 %v242
    %v390 = vpop.f32.mrb[0].mxu0
    %v391 = vadd.f32 0.0, %v390
    %v392 = vpop.f32.mrb[0].mxu0
    %393 = vmatprep.mubr.f32.mxu0 %v245
    %394 = vmatmul.mubr.f32.gmra.mrb[0].mxu0 %v244
    %v395 = vpop.f32.mrb[0].mxu0
    %v396 = vadd.f32 0.0, %v395
    %v397 = vpop.f32.mrb[0].mxu0
    %398 = vmatprep.mubr.f32.mxu0 %v247
    %399 = vmatmul.mubr.f32.gmra.mrb[0].mxu0 %v246
    %v400 = vpop.f32.mrb[0].mxu0
    %v401 = vadd.f32 0.0, %v400
    %v402 = vpop.f32.mrb[0].mxu0
    %403 = vmatprep.mubr.f32.mxu0 %v249
    %404 = vmatmul.mubr.f32.gmra.mrb[0].mxu0 %v248
    %v405 = vpop.f32.mrb[0].mxu0
    %v406 = vadd.f32 0.0, %v405
    %v407 = vpop.f32.mrb[0].mxu0
    %408 = vmatprep.mubr.f32.mxu0 %v251
    %409 = vmatmul.mubr.f32.gmra.mrb[0].mxu0 %v250
    %v410 = vpop.f32.mrb[0].mxu0
    %v411 = vadd.f32 0.0, %v410
    %v412 = vpop.f32.mrb[0].mxu0
    %413 = vmatprep.mubr.f32.mxu0 %v253
    %414 = vmatmul.mubr.f32.gmra.mrb[0].mxu0 %v252
    %v415 = vpop.f32.mrb[0].mxu0
    %v416 = vadd.f32 0.0, %v415
    %v417 = vpop.f32.mrb[0].mxu0
    %418 = vmatprep.mubr.f32.mxu0 %v255
    %419 = vmatmul.mubr.f32.gmra.mrb[0].mxu0 %v254
    %v420 = vpop.f32.mrb[0].mxu0
    %v421 = vadd.f32 0.0, %v420
    %v422 = vpop.f32.mrb[0].mxu0
    %423 = vmatprep.mubr.f32.mxu0 %v257
    %424 = vmatmul.mubr.f32.gmra.mrb[0].mxu0 %v256
    %v425 = vpop.f32.mrb[0].mxu0
    %v426 = vadd.f32 0.0, %v425
    %v427 = vpop.f32.mrb[0].mxu0
    %428 = vmatprep.mubr.f32.mxu0 %v259
    %429 = vmatmul.mubr.f32.gmra.mrb[0].mxu0 %v258
    %v430 = vpop.f32.mrb[0].mxu0
    %v431 = vadd.f32 0.0, %v430
    %v432 = vpop.f32.mrb[0].mxu0
    %433 = vmatprep.mubr.f32.mxu0 %v261
    %434 = vmatmul.mubr.f32.gmra.mrb[0].mxu0 %v260
    %v435 = vpop.f32.mrb[0].mxu0
    %v436 = vadd.f32 0.0, %v435
    %v437 = vpop.f32.mrb[0].mxu0
    %438 = vmatprep.mubr.f32.mxu0 %v263
    %439 = vmatmul.mubr.f32.gmra.mrb[0].mxu0 %v262
    %v440 = vpop.f32.mrb[0].mxu0
    %v441 = vadd.f32 0.0, %v440
    %v442 = vpop.f32.mrb[0].mxu0
    %443 = vmatprep.mubr.f32.mxu0 %v265
    %444 = vmatmul.mubr.f32.gmra.mrb[0].mxu0 %v264
    %v445 = vpop.f32.mrb[0].mxu0
    %v446 = vadd.f32 0.0, %v445
    %v447 = vpop.f32.mrb[0].mxu0
    %448 = vmatprep.mubr.f32.mxu0 %v267
    %449 = vmatmul.mubr.f32.gmra.mrb[0].mxu0 %v266
    %v450 = vpop.f32.mrb[0].mxu0
    %v451 = vadd.f32 0.0, %v450
    %v452 = vpop.f32.mrb[0].mxu0
    %453 = vmatprep.mubr.f32.mxu0 %v269
    %454 = vmatmul.mubr.f32.gmra.mrb[0].mxu0 %v268
    %v455 = vpop.f32.mrb[0].mxu0
    %v456 = vadd.f32 0.0, %v455
    %v457 = vpop.f32.mrb[0].mxu0
    %458 = vmatprep.mubr.f32.mxu0 %v271
    %459 = vmatmul.mubr.f32.gmra.mrb[0].mxu0 %v270
    %v460 = vpop.f32.mrb[0].mxu0
    %v461 = vadd.f32 0.0, %v460
    %v462 = vpop.f32.mrb[0].mxu0
    %463 = vmatprep.mubr.f32.mxu0 %v273
    %464 = vmatmul.mubr.f32.gmra.mrb[0].mxu0 %v272
    %v465 = vpop.f32.mrb[0].mxu0
    %v466 = vadd.f32 0.0, %v465
    %v467 = vpop.f32.mrb[0].mxu0
    %468 = vmatprep.mubr.f32.mxu0 %v275
    %469 = vmatmul.mubr.f32.gmra.mrb[0].mxu0 %v274
    %v470 = vpop.f32.mrb[0].mxu0
    %v471 = vadd.f32 0.0, %v470
    %v472 = vpop.f32.mrb[0].mxu0
    %473 = vmatprep.mubr.f32.mxu0 %v277
    %474 = vmatmul.mubr.f32.gmra.mrb[0].mxu0 %v276
    %v475 = vpop.f32.mrb[0].mxu0
    %v476 = vadd.f32 0.0, %v475
    %v477 = vpop.f32.mrb[0].mxu0
    %478 = vmatprep.mubr.f32.mxu0 %v279
    %479 = vmatmul.mubr.f32.gmra.mrb[0].mxu0 %v278
    %v480 = vpop.f32.mrb[0].mxu0
    %v481 = vadd.f32 0.0, %v480
    %v482 = vpop.f32.mrb[0].mxu0
    %483 = vmatprep.mubr.f32.mxu0 %v281
    %484 = vmatmul.mubr.f32.gmra.mrb[0].mxu0 %v280
    %v485 = vpop.f32.mrb[0].mxu0
    %v486 = vadd.f32 0.0, %v485
    %v487 = vpop.f32.mrb[0].mxu0
    %488 = vmatprep.mubr.f32.mxu0 %v283
    %489 = vmatmul.mubr.f32.gmra.mrb[0].mxu0 %v282
    %v490 = vpop.f32.mrb[0].mxu0
    %v491 = vadd.f32 0.0, %v490
    %v492 = vpop.f32.mrb[0].mxu0
    %493 = vmatprep.mubr.f32.mxu0 %v285
    %494 = vmatmul.mubr.f32.gmra.mrb[0].mxu0 %v284
    %v495 = vpop.f32.mrb[0].mxu0
    %v496 = vadd.f32 0.0, %v495
    %v497 = vpop.f32.mrb[0].mxu0
    %498 = vmatprep.mubr.f32.mxu0 %v287
    %499 = vmatmul.mubr.f32.gmra.mrb[0].mxu0 %v286
    %v500 = vpop.f32.mrb[0].mxu0
    %v501 = vadd.f32 0.0, %v500
    %v502 = vpop.f32.mrb[0].mxu0
    %503 = vmatprep.mubr.f32.mxu0 %v289
    %504 = vmatmul.mubr.f32.gmra.mrb[0].mxu0 %v288
    %v505 = vpop.f32.mrb[0].mxu0
    %v506 = vadd.f32 0.0, %v505
    %v507 = vpop.f32.mrb[0].mxu0
    %508 = vmatprep.mubr.f32.mxu0 %v291
    %509 = vmatmul.mubr.f32.gmra.mrb[0].mxu0 %v290
    %v510 = vpop.f32.mrb[0].mxu0
    %v511 = vadd.f32 0.0, %v510
    %v512 = vpop.f32.mrb[0].mxu0
    %513 = vmatprep.mubr.f32.mxu0 %v293
    %514 = vmatmul.mubr.f32.gmra.mrb[0].mxu0 %v292
    %v515 = vpop.f32.mrb[0].mxu0
    %v516 = vadd.f32 0.0, %v515
    %v517 = vpop.f32.mrb[0].mxu0
    %518 = vdwg.mxu0
    %v519 = vadd.f32 %v166, %v361
    %v520 = vadd.f32 %v167, %v366
    %v521 = vadd.f32 %v168, %v371
    %v522 = vadd.f32 %v169, %v376
    %v523 = vadd.f32 %v170, %v381
    %v524 = vadd.f32 %v171, %v386
    %v525 = vadd.f32 %v172, %v391
    %v526 = vadd.f32 %v173, %v396
    %v527 = vadd.f32 %v174, %v401
    %v528 = vadd.f32 %v175, %v406
    %v529 = vadd.f32 %v176, %v411
    %v530 = vadd.f32 %v177, %v416
    %v531 = vadd.f32 %v178, %v421
    %v532 = vadd.f32 %v179, %v426
    %v533 = vadd.f32 %v180, %v431
    %v534 = vadd.f32 %v181, %v436
    %v535 = vadd.f32 %v182, %v441
    %v536 = vadd.f32 %v183, %v446
    %v537 = vadd.f32 %v184, %v451
    %v538 = vadd.f32 %v185, %v456
    %v539 = vadd.f32 %v186, %v461
    %v540 = vadd.f32 %v187, %v466
    %v541 = vadd.f32 %v188, %v471
    %v542 = vadd.f32 %v189, %v476
    %v543 = vadd.f32 %v190, %v481
    %v544 = vadd.f32 %v191, %v486
    %v545 = vadd.f32 %v192, %v491
    %v546 = vadd.f32 %v193, %v496
    %v547 = vadd.f32 %v194, %v501
    %v548 = vadd.f32 %v195, %v506
    %v549 = vadd.f32 %v196, %v511
    %v550 = vadd.f32 %v197, %v516
    %551 = vst [vmem:[#allocation2] sm:$0xff] %v519
    %552 = vst [vmem:[#allocation2 + $0x8] sm:$0xff] %v520
    %553 = vst [vmem:[#allocation2 + $0x10] sm:$0xff] %v521
    %554 = vst [vmem:[#allocation2 + $0x18] sm:$0xff] %v522
    %555 = vst [vmem:[#allocation2 + $0x20] sm:$0xff] %v523
    %556 = vst [vmem:[#allocation2 + $0x28] sm:$0xff] %v524
    %557 = vst [vmem:[#allocation2 + $0x30] sm:$0xff] %v525
    %558 = vst [vmem:[#allocation2 + $0x38] sm:$0xff] %v526
    %559 = vst [vmem:[#allocation2 + $0x40] sm:$0xff] %v527
    %560 = vst [vmem:[#allocation2 + $0x48] sm:$0xff] %v528
    %561 = vst [vmem:[#allocation2 + $0x50] sm:$0xff] %v529
    %562 = vst [vmem:[#allocation2 + $0x58] sm:$0xff] %v530
    %563 = vst [vmem:[#allocation2 + $0x60] sm:$0xff] %v531
    %564 = vst [vmem:[#allocation2 + $0x68] sm:$0xff] %v532
    %565 = vst [vmem:[#allocation2 + $0x70] sm:$0xff] %v533
    %566 = vst [vmem:[#allocation2 + $0x78] sm:$0xff] %v534
    %567 = vst [vmem:[#allocation2 + $0x80] sm:$0xff] %v535
    %568 = vst [vmem:[#allocation2 + $0x88] sm:$0xff] %v536
    %569 = vst [vmem:[#allocation2 + $0x90] sm:$0xff] %v537
    %570 = vst [vmem:[#allocation2 + $0x98] sm:$0xff] %v538
    %571 = vst [vmem:[#allocation2 + $0xa0] sm:$0xff] %v539
    %572 = vst [vmem:[#allocation2 + $0xa8] sm:$0xff] %v540
    %573 = vst [vmem:[#allocation2 + $0xb0] sm:$0xff] %v541
    %574 = vst [vmem:[#allocation2 + $0xb8] sm:$0xff] %v542
    %575 = vst [vmem:[#allocation2 + $0xc0] sm:$0xff] %v543
    %576 = vst [vmem:[#allocation2 + $0xc8] sm:$0xff] %v544
    %577 = vst [vmem:[#allocation2 + $0xd0] sm:$0xff] %v545
    %578 = vst [vmem:[#allocation2 + $0xd8] sm:$0xff] %v546
    %579 = vst [vmem:[#allocation2 + $0xe0] sm:$0xff] %v547
    %580 = vst [vmem:[#allocation2 + $0xe8] sm:$0xff] %v548
    %581 = vst [vmem:[#allocation2 + $0xf0] sm:$0xff] %v549
    %582 = vst [vmem:[#allocation2 + $0xf8] sm:$0xff] %v550
    // Predicated region
    $region50: #{model_forward.2} parent=1 // pred_check
      %p583 = pneg %p96
    $region51: #{model_forward.2} parent=1 // pred_check_branch
      %585 = sbr.rel (%p583) target = $region53
    $region52: #{model_forward.2} parent=1 // pred_region
      %v586 = vld [vmem:[#allocation2] sm:$0xff]
      %v587 = vld [vmem:[#allocation2 + $0x8] sm:$0xff]
      %v588 = vld [vmem:[#allocation2 + $0x10] sm:$0xff]
      %v589 = vld [vmem:[#allocation2 + $0x18] sm:$0xff]
      %v590 = vld [vmem:[#allocation2 + $0x20] sm:$0xff]
      %v591 = vld [vmem:[#allocation2 + $0x28] sm:$0xff]
      %v592 = vld [vmem:[#allocation2 + $0x30] sm:$0xff]
      %v593 = vld [vmem:[#allocation2 + $0x38] sm:$0xff]
      %v594 = vld [vmem:[#allocation2 + $0x40] sm:$0xff]
      %v595 = vld [vmem:[#allocation2 + $0x48] sm:$0xff]
      %v596 = vld [vmem:[#allocation2 + $0x50] sm:$0xff]
      %v597 = vld [vmem:[#allocation2 + $0x58] sm:$0xff]
      %v598 = vld [vmem:[#allocation2 + $0x60] sm:$0xff]
      %v599 = vld [vmem:[#allocation2 + $0x68] sm:$0xff]
      %v600 = vld [vmem:[#allocation2 + $0x70] sm:$0xff]
      %v601 = vld [vmem:[#allocation2 + $0x78] sm:$0xff]
      %v602 = vld [vmem:[#allocation2 + $0x80] sm:$0xff]
      %v603 = vld [vmem:[#allocation2 + $0x88] sm:$0xff]
      %v604 = vld [vmem:[#allocation2 + $0x90] sm:$0xff]
      %v605 = vld [vmem:[#allocation2 + $0x98] sm:$0xff]
      %v606 = vld [vmem:[#allocation2 + $0xa0] sm:$0xff]
      %v607 = vld [vmem:[#allocation2 + $0xa8] sm:$0xff]
      %v608 = vld [vmem:[#allocation2 + $0xb0] sm:$0xff]
      %v609 = vld [vmem:[#allocation2 + $0xb8] sm:$0xff]
      %v610 = vld [vmem:[#allocation2 + $0xc0] sm:$0xff]
      %v611 = vld [vmem:[#allocation2 + $0xc8] sm:$0xff]
      %v612 = vld [vmem:[#allocation2 + $0xd0] sm:$0xff]
      %v613 = vld [vmem:[#allocation2 + $0xd8] sm:$0xff]
      %v614 = vld [vmem:[#allocation2 + $0xe0] sm:$0xff]
      %v615 = vld [vmem:[#allocation2 + $0xe8] sm:$0xff]
      %v616 = vld [vmem:[#allocation2 + $0xf0] sm:$0xff]
      %v617 = vld [vmem:[#allocation2 + $0xf8] sm:$0xff]
      %v618 = vld [vmem:[#allocation10] sm:$0xff]
      %v619 = vld [vmem:[#allocation10 + $0x8] sm:$0xff]
      %v620 = vld [vmem:[#allocation10 + $0x10] sm:$0xff]
      %v621 = vld [vmem:[#allocation10 + $0x18] sm:$0xff]
      %v622 = vld [vmem:[#allocation10 + $0x20] sm:$0xff]
      %v623 = vld [vmem:[#allocation10 + $0x28] sm:$0xff]
      %v624 = vld [vmem:[#allocation10 + $0x30] sm:$0xff]
      %v625 = vld [vmem:[#allocation10 + $0x38] sm:$0xff]
      %v626 = vld [vmem:[#allocation10 + $0x40] sm:$0xff]
      %v627 = vld [vmem:[#allocation10 + $0x48] sm:$0xff]
      %v628 = vld [vmem:[#allocation10 + $0x50] sm:$0xff]
      %v629 = vld [vmem:[#allocation10 + $0x58] sm:$0xff]
      %v630 = vld [vmem:[#allocation10 + $0x60] sm:$0xff]
      %v631 = vld [vmem:[#allocation10 + $0x68] sm:$0xff]
      %v632 = vld [vmem:[#allocation10 + $0x70] sm:$0xff]
      %v633 = vld [vmem:[#allocation10 + $0x78] sm:$0xff]
      %v634 = vld [vmem:[#allocation10 + $0x80] sm:$0xff]
      %v635 = vld [vmem:[#allocation10 + $0x88] sm:$0xff]
      %v636 = vld [vmem:[#allocation10 + $0x90] sm:$0xff]
      %v637 = vld [vmem:[#allocation10 + $0x98] sm:$0xff]
      %v638 = vld [vmem:[#allocation10 + $0xa0] sm:$0xff]
      %v639 = vld [vmem:[#allocation10 + $0xa8] sm:$0xff]
      %v640 = vld [vmem:[#allocation10 + $0xb0] sm:$0xff]
      %v641 = vld [vmem:[#allocation10 + $0xb8] sm:$0xff]
      %v642 = vld [vmem:[#allocation10 + $0xc0] sm:$0xff]
      %v643 = vld [vmem:[#allocation10 + $0xc8] sm:$0xff]
      %v644 = vld [vmem:[#allocation10 + $0xd0] sm:$0xff]
      %v645 = vld [vmem:[#allocation10 + $0xd8] sm:$0xff]
      %v646 = vld [vmem:[#allocation10 + $0xe0] sm:$0xff]
      %v647 = vld [vmem:[#allocation10 + $0xe8] sm:$0xff]
      %v648 = vld [vmem:[#allocation10 + $0xf0] sm:$0xff]
      %v649 = vld [vmem:[#allocation10 + $0xf8] sm:$0xff]
      %651 = vset.pattern.permute.xlu0 0
      %652 = vperm.xlu0 %651, %v618
      %v653 = vpop.permute.xlu0 %652
      %656 = vset.pattern.permute.xlu0 0
      %657 = vperm.xlu0 %656, %v619
      %v658 = vpop.permute.xlu0 %657
      %661 = vset.pattern.permute.xlu0 0
      %662 = vperm.xlu0 %661, %v620
      %v663 = vpop.permute.xlu0 %662
      %666 = vset.pattern.permute.xlu0 0
      %667 = vperm.xlu0 %666, %v621
      %v668 = vpop.permute.xlu0 %667
      %671 = vset.pattern.permute.xlu0 0
      %672 = vperm.xlu0 %671, %v622
      %v673 = vpop.permute.xlu0 %672
      %676 = vset.pattern.permute.xlu0 0
      %677 = vperm.xlu0 %676, %v623
      %v678 = vpop.permute.xlu0 %677
      %681 = vset.pattern.permute.xlu0 0
      %682 = vperm.xlu0 %681, %v624
      %v683 = vpop.permute.xlu0 %682
      %686 = vset.pattern.permute.xlu0 0
      %687 = vperm.xlu0 %686, %v625
      %v688 = vpop.permute.xlu0 %687
      %691 = vset.pattern.permute.xlu0 0
      %692 = vperm.xlu0 %691, %v626
      %v693 = vpop.permute.xlu0 %692
      %696 = vset.pattern.permute.xlu0 0
      %697 = vperm.xlu0 %696, %v627
      %v698 = vpop.permute.xlu0 %697
      %701 = vset.pattern.permute.xlu0 0
      %702 = vperm.xlu0 %701, %v628
      %v703 = vpop.permute.xlu0 %702
      %706 = vset.pattern.permute.xlu0 0
      %707 = vperm.xlu0 %706, %v629
      %v708 = vpop.permute.xlu0 %707
      %711 = vset.pattern.permute.xlu0 0
      %712 = vperm.xlu0 %711, %v630
      %v713 = vpop.permute.xlu0 %712
      %716 = vset.pattern.permute.xlu0 0
      %717 = vperm.xlu0 %716, %v631
      %v718 = vpop.permute.xlu0 %717
      %721 = vset.pattern.permute.xlu0 0
      %722 = vperm.xlu0 %721, %v632
      %v723 = vpop.permute.xlu0 %722
      %726 = vset.pattern.permute.xlu0 0
      %727 = vperm.xlu0 %726, %v633
      %v728 = vpop.permute.xlu0 %727
      %731 = vset.pattern.permute.xlu0 0
      %732 = vperm.xlu0 %731, %v634
      %v733 = vpop.permute.xlu0 %732
      %736 = vset.pattern.permute.xlu0 0
      %737 = vperm.xlu0 %736, %v635
      %v738 = vpop.permute.xlu0 %737
      %741 = vset.pattern.permute.xlu0 0
      %742 = vperm.xlu0 %741, %v636
      %v743 = vpop.permute.xlu0 %742
      %746 = vset.pattern.permute.xlu0 0
      %747 = vperm.xlu0 %746, %v637
      %v748 = vpop.permute.xlu0 %747
      %751 = vset.pattern.permute.xlu0 0
      %752 = vperm.xlu0 %751, %v638
      %v753 = vpop.permute.xlu0 %752
      %756 = vset.pattern.permute.xlu0 0
      %757 = vperm.xlu0 %756, %v639
      %v758 = vpop.permute.xlu0 %757
      %761 = vset.pattern.permute.xlu0 0
      %762 = vperm.xlu0 %761, %v640
      %v763 = vpop.permute.xlu0 %762
      %766 = vset.pattern.permute.xlu0 0
      %767 = vperm.xlu0 %766, %v641
      %v768 = vpop.permute.xlu0 %767
      %771 = vset.pattern.permute.xlu0 0
      %772 = vperm.xlu0 %771, %v642
      %v773 = vpop.permute.xlu0 %772
      %776 = vset.pattern.permute.xlu0 0
      %777 = vperm.xlu0 %776, %v643
      %v778 = vpop.permute.xlu0 %777
      %781 = vset.pattern.permute.xlu0 0
      %782 = vperm.xlu0 %781, %v644
      %v783 = vpop.permute.xlu0 %782
      %786 = vset.pattern.permute.xlu0 0
      %787 = vperm.xlu0 %786, %v645
      %v788 = vpop.permute.xlu0 %787
      %791 = vset.pattern.permute.xlu0 0
      %792 = vperm.xlu0 %791, %v646
      %v793 = vpop.permute.xlu0 %792
      %796 = vset.pattern.permute.xlu0 0
      %797 = vperm.xlu0 %796, %v647
      %v798 = vpop.permute.xlu0 %797
      %801 = vset.pattern.permute.xlu0 0
      %802 = vperm.xlu0 %801, %v648
      %v803 = vpop.permute.xlu0 %802
      %806 = vset.pattern.permute.xlu0 0
      %807 = vperm.xlu0 %806, %v649
      %v808 = vpop.permute.xlu0 %807
      %v810 = vmul.f32 %v586, %v653
      %v811 = vmul.f32 %v587, %v658
      %v812 = vmul.f32 %v588, %v663
      %v813 = vmul.f32 %v589, %v668
      %v814 = vmul.f32 %v590, %v673
      %v815 = vmul.f32 %v591, %v678
      %v816 = vmul.f32 %v592, %v683
      %v817 = vmul.f32 %v593, %v688
      %v818 = vmul.f32 %v594, %v693
      %v819 = vmul.f32 %v595, %v698
      %v820 = vmul.f32 %v596, %v703
      %v821 = vmul.f32 %v597, %v708
      %v822 = vmul.f32 %v598, %v713
      %v823 = vmul.f32 %v599, %v718
      %v824 = vmul.f32 %v600, %v723
      %v825 = vmul.f32 %v601, %v728
      %v826 = vmul.f32 %v602, %v733
      %v827 = vmul.f32 %v603, %v738
      %v828 = vmul.f32 %v604, %v743
      %v829 = vmul.f32 %v605, %v748
      %v830 = vmul.f32 %v606, %v753
      %v831 = vmul.f32 %v607, %v758
      %v832 = vmul.f32 %v608, %v763
      %v833 = vmul.f32 %v609, %v768
      %v834 = vmul.f32 %v610, %v773
      %v835 = vmul.f32 %v611, %v778
      %v836 = vmul.f32 %v612, %v783
      %v837 = vmul.f32 %v613, %v788
      %v838 = vmul.f32 %v614, %v793
      %v839 = vmul.f32 %v615, %v798
      %v840 = vmul.f32 %v616, %v803
      %v841 = vmul.f32 %v617, %v808
      %v842 = vld [vmem:[#allocation9] sm:$0xff]
      %v843 = vld [vmem:[#allocation9 + $0x8] sm:$0xff]
      %v844 = vld [vmem:[#allocation9 + $0x10] sm:$0xff]
      %v845 = vld [vmem:[#allocation9 + $0x18] sm:$0xff]
      %v846 = vld [vmem:[#allocation9 + $0x20] sm:$0xff]
      %v847 = vld [vmem:[#allocation9 + $0x28] sm:$0xff]
      %v848 = vld [vmem:[#allocation9 + $0x30] sm:$0xff]
      %v849 = vld [vmem:[#allocation9 + $0x38] sm:$0xff]
      %v850 = vld [vmem:[#allocation9 + $0x40] sm:$0xff]
      %v851 = vld [vmem:[#allocation9 + $0x48] sm:$0xff]
      %v852 = vld [vmem:[#allocation9 + $0x50] sm:$0xff]
      %v853 = vld [vmem:[#allocation9 + $0x58] sm:$0xff]
      %v854 = vld [vmem:[#allocation9 + $0x60] sm:$0xff]
      %v855 = vld [vmem:[#allocation9 + $0x68] sm:$0xff]
      %v856 = vld [vmem:[#allocation9 + $0x70] sm:$0xff]
      %v857 = vld [vmem:[#allocation9 + $0x78] sm:$0xff]
      %v858 = vld [vmem:[#allocation9 + $0x80] sm:$0xff]
      %v859 = vld [vmem:[#allocation9 + $0x88] sm:$0xff]
      %v860 = vld [vmem:[#allocation9 + $0x90] sm:$0xff]
      %v861 = vld [vmem:[#allocation9 + $0x98] sm:$0xff]
      %v862 = vld [vmem:[#allocation9 + $0xa0] sm:$0xff]
      %v863 = vld [vmem:[#allocation9 + $0xa8] sm:$0xff]
      %v864 = vld [vmem:[#allocation9 + $0xb0] sm:$0xff]
      %v865 = vld [vmem:[#allocation9 + $0xb8] sm:$0xff]
      %v866 = vld [vmem:[#allocation9 + $0xc0] sm:$0xff]
      %v867 = vld [vmem:[#allocation9 + $0xc8] sm:$0xff]
      %v868 = vld [vmem:[#allocation9 + $0xd0] sm:$0xff]
      %v869 = vld [vmem:[#allocation9 + $0xd8] sm:$0xff]
      %v870 = vld [vmem:[#allocation9 + $0xe0] sm:$0xff]
      %v871 = vld [vmem:[#allocation9 + $0xe8] sm:$0xff]
      %v872 = vld [vmem:[#allocation9 + $0xf0] sm:$0xff]
      %v873 = vld [vmem:[#allocation9 + $0xf8] sm:$0xff]
      %s874 = sld [smem:[#allocation3]]
      %v875 = vstv %s874
      %v876 = vmul.f32 %v810, %v875
      %v877 = vmul.f32 %v811, %v875
      %v878 = vmul.f32 %v812, %v875
      %v879 = vmul.f32 %v813, %v875
      %v880 = vmul.f32 %v814, %v875
      %v881 = vmul.f32 %v815, %v875
      %v882 = vmul.f32 %v816, %v875
      %v883 = vmul.f32 %v817, %v875
      %v884 = vmul.f32 %v818, %v875
      %v885 = vmul.f32 %v819, %v875
      %v886 = vmul.f32 %v820, %v875
      %v887 = vmul.f32 %v821, %v875
      %v888 = vmul.f32 %v822, %v875
      %v889 = vmul.f32 %v823, %v875
      %v890 = vmul.f32 %v824, %v875
      %v891 = vmul.f32 %v825, %v875
      %v892 = vmul.f32 %v826, %v875
      %v893 = vmul.f32 %v827, %v875
      %v894 = vmul.f32 %v828, %v875
      %v895 = vmul.f32 %v829, %v875
      %v896 = vmul.f32 %v830, %v875
      %v897 = vmul.f32 %v831, %v875
      %v898 = vmul.f32 %v832, %v875
      %v899 = vmul.f32 %v833, %v875
      %v900 = vmul.f32 %v834, %v875
      %v901 = vmul.f32 %v835, %v875
      %v902 = vmul.f32 %v836, %v875
      %v903 = vmul.f32 %v837, %v875
      %v904 = vmul.f32 %v838, %v875
      %v905 = vmul.f32 %v839, %v875
      %v906 = vmul.f32 %v840, %v875
      %v907 = vmul.f32 %v841, %v875
      %v908 = vadd.f32 %v842, %v876
      %v909 = vadd.f32 %v843, %v877
      %v910 = vadd.f32 %v844, %v878
      %v911 = vadd.f32 %v845, %v879
      %v912 = vadd.f32 %v846, %v880
      %v913 = vadd.f32 %v847, %v881
      %v914 = vadd.f32 %v848, %v882
      %v915 = vadd.f32 %v849, %v883
      %v916 = vadd.f32 %v850, %v884
      %v917 = vadd.f32 %v851, %v885
      %v918 = vadd.f32 %v852, %v886
      %v919 = vadd.f32 %v853, %v887
      %v920 = vadd.f32 %v854, %v888
      %v921 = vadd.f32 %v855, %v889
      %v922 = vadd.f32 %v856, %v890
      %v923 = vadd.f32 %v857, %v891
      %v924 = vadd.f32 %v858, %v892
      %v925 = vadd.f32 %v859, %v893
      %v926 = vadd.f32 %v860, %v894
      %v927 = vadd.f32 %v861, %v895
      %v928 = vadd.f32 %v862, %v896
      %v929 = vadd.f32 %v863, %v897
      %v930 = vadd.f32 %v864, %v898
      %v931 = vadd.f32 %v865, %v899
      %v932 = vadd.f32 %v866, %v900
      %v933 = vadd.f32 %v867, %v901
      %v934 = vadd.f32 %v868, %v902
      %v935 = vadd.f32 %v869, %v903
      %v936 = vadd.f32 %v870, %v904
      %v937 = vadd.f32 %v871, %v905
      %v938 = vadd.f32 %v872, %v906
      %v939 = vadd.f32 %v873, %v907
      %940 = vst [vmem:[#allocation14] sm:$0xff] %v908
      %941 = vst [vmem:[#allocation14 + $0x8] sm:$0xff] %v909
      %942 = vst [vmem:[#allocation14 + $0x10] sm:$0xff] %v910
      %943 = vst [vmem:[#allocation14 + $0x18] sm:$0xff] %v911
      %944 = vst [vmem:[#allocation14 + $0x20] sm:$0xff] %v912
      %945 = vst [vmem:[#allocation14 + $0x28] sm:$0xff] %v913
      %946 = vst [vmem:[#allocation14 + $0x30] sm:$0xff] %v914
      %947 = vst [vmem:[#allocation14 + $0x38] sm:$0xff] %v915
      %948 = vst [vmem:[#allocation14 + $0x40] sm:$0xff] %v916
      %949 = vst [vmem:[#allocation14 + $0x48] sm:$0xff] %v917
      %950 = vst [vmem:[#allocation14 + $0x50] sm:$0xff] %v918
      %951 = vst [vmem:[#allocation14 + $0x58] sm:$0xff] %v919
      %952 = vst [vmem:[#allocation14 + $0x60] sm:$0xff] %v920
      %953 = vst [vmem:[#allocation14 + $0x68] sm:$0xff] %v921
      %954 = vst [vmem:[#allocation14 + $0x70] sm:$0xff] %v922
      %955 = vst [vmem:[#allocation14 + $0x78] sm:$0xff] %v923
      %956 = vst [vmem:[#allocation14 + $0x80] sm:$0xff] %v924
      %957 = vst [vmem:[#allocation14 + $0x88] sm:$0xff] %v925
      %958 = vst [vmem:[#allocation14 + $0x90] sm:$0xff] %v926
      %959 = vst [vmem:[#allocation14 + $0x98] sm:$0xff] %v927
      %960 = vst [vmem:[#allocation14 + $0xa0] sm:$0xff] %v928
      %961 = vst [vmem:[#allocation14 + $0xa8] sm:$0xff] %v929
      %962 = vst [vmem:[#allocation14 + $0xb0] sm:$0xff] %v930
      %963 = vst [vmem:[#allocation14 + $0xb8] sm:$0xff] %v931
      %964 = vst [vmem:[#allocation14 + $0xc0] sm:$0xff] %v932
      %965 = vst [vmem:[#allocation14 + $0xc8] sm:$0xff] %v933
      %966 = vst [vmem:[#allocation14 + $0xd0] sm:$0xff] %v934
      %967 = vst [vmem:[#allocation14 + $0xd8] sm:$0xff] %v935
      %968 = vst [vmem:[#allocation14 + $0xe0] sm:$0xff] %v936
      %969 = vst [vmem:[#allocation14 + $0xe8] sm:$0xff] %v937
      %970 = vst [vmem:[#allocation14 + $0xf0] sm:$0xff] %v938
      %971 = vst [vmem:[#allocation14 + $0xf8] sm:$0xff] %v939
      %v972 = vld [vmem:[#allocation12] sm:$0xff]
      %v973 = vld [vmem:[#allocation12 + $0x8] sm:$0xff]
      %v974 = vld [vmem:[#allocation12 + $0x10] sm:$0xff]
      %v975 = vld [vmem:[#allocation12 + $0x18] sm:$0xff]
      %v976 = vld [vmem:[#allocation12 + $0x20] sm:$0xff]
      %v977 = vld [vmem:[#allocation12 + $0x28] sm:$0xff]
      %v978 = vld [vmem:[#allocation12 + $0x30] sm:$0xff]
      %v979 = vld [vmem:[#allocation12 + $0x38] sm:$0xff]
      %v980 = vld [vmem:[#allocation12 + $0x40] sm:$0xff]
      %v981 = vld [vmem:[#allocation12 + $0x48] sm:$0xff]
      %v982 = vld [vmem:[#allocation12 + $0x50] sm:$0xff]
      %v983 = vld [vmem:[#allocation12 + $0x58] sm:$0xff]
      %v984 = vld [vmem:[#allocation12 + $0x60] sm:$0xff]
      %v985 = vld [vmem:[#allocation12 + $0x68] sm:$0xff]
      %v986 = vld [vmem:[#allocation12 + $0x70] sm:$0xff]
      %v987 = vld [vmem:[#allocation12 + $0x78] sm:$0xff]
      %v988 = vld [vmem:[#allocation12 + $0x80] sm:$0xff]
      %v989 = vld [vmem:[#allocation12 + $0x88] sm:$0xff]
      %v990 = vld [vmem:[#allocation12 + $0x90] sm:$0xff]
      %v991 = vld [vmem:[#allocation12 + $0x98] sm:$0xff]
      %v992 = vld [vmem:[#allocation12 + $0xa0] sm:$0xff]
      %v993 = vld [vmem:[#allocation12 + $0xa8] sm:$0xff]
      %v994 = vld [vmem:[#allocation12 + $0xb0] sm:$0xff]
      %v995 = vld [vmem:[#allocation12 + $0xb8] sm:$0xff]
      %v996 = vld [vmem:[#allocation12 + $0xc0] sm:$0xff]
      %v997 = vld [vmem:[#allocation12 + $0xc8] sm:$0xff]
      %v998 = vld [vmem:[#allocation12 + $0xd0] sm:$0xff]
      %v999 = vld [vmem:[#allocation12 + $0xd8] sm:$0xff]
      %v1000 = vld [vmem:[#allocation12 + $0xe0] sm:$0xff]
      %v1001 = vld [vmem:[#allocation12 + $0xe8] sm:$0xff]
      %v1002 = vld [vmem:[#allocation12 + $0xf0] sm:$0xff]
      %v1003 = vld [vmem:[#allocation12 + $0xf8] sm:$0xff]
      %1005 = vset.pattern.permute.xlu0 0
      %1006 = vperm.xlu0 %1005, %v972
      %v1007 = vpop.permute.xlu0 %1006
      %1010 = vset.pattern.permute.xlu0 0
      %1011 = vperm.xlu0 %1010, %v973
      %v1012 = vpop.permute.xlu0 %1011
      %1015 = vset.pattern.permute.xlu0 0
      %1016 = vperm.xlu0 %1015, %v974
      %v1017 = vpop.permute.xlu0 %1016
      %1020 = vset.pattern.permute.xlu0 0
      %1021 = vperm.xlu0 %1020, %v975
      %v1022 = vpop.permute.xlu0 %1021
      %1025 = vset.pattern.permute.xlu0 0
      %1026 = vperm.xlu0 %1025, %v976
      %v1027 = vpop.permute.xlu0 %1026
      %1030 = vset.pattern.permute.xlu0 0
      %1031 = vperm.xlu0 %1030, %v977
      %v1032 = vpop.permute.xlu0 %1031
      %1035 = vset.pattern.permute.xlu0 0
      %1036 = vperm.xlu0 %1035, %v978
      %v1037 = vpop.permute.xlu0 %1036
      %1040 = vset.pattern.permute.xlu0 0
      %1041 = vperm.xlu0 %1040, %v979
      %v1042 = vpop.permute.xlu0 %1041
      %1045 = vset.pattern.permute.xlu0 0
      %1046 = vperm.xlu0 %1045, %v980
      %v1047 = vpop.permute.xlu0 %1046
      %1050 = vset.pattern.permute.xlu0 0
      %1051 = vperm.xlu0 %1050, %v981
      %v1052 = vpop.permute.xlu0 %1051
      %1055 = vset.pattern.permute.xlu0 0
      %1056 = vperm.xlu0 %1055, %v982
      %v1057 = vpop.permute.xlu0 %1056
      %1060 = vset.pattern.permute.xlu0 0
      %1061 = vperm.xlu0 %1060, %v983
      %v1062 = vpop.permute.xlu0 %1061
      %1065 = vset.pattern.permute.xlu0 0
      %1066 = vperm.xlu0 %1065, %v984
      %v1067 = vpop.permute.xlu0 %1066
      %1070 = vset.pattern.permute.xlu0 0
      %1071 = vperm.xlu0 %1070, %v985
      %v1072 = vpop.permute.xlu0 %1071
      %1075 = vset.pattern.permute.xlu0 0
      %1076 = vperm.xlu0 %1075, %v986
      %v1077 = vpop.permute.xlu0 %1076
      %1080 = vset.pattern.permute.xlu0 0
      %1081 = vperm.xlu0 %1080, %v987
      %v1082 = vpop.permute.xlu0 %1081
      %1085 = vset.pattern.permute.xlu0 0
      %1086 = vperm.xlu0 %1085, %v988
      %v1087 = vpop.permute.xlu0 %1086
      %1090 = vset.pattern.permute.xlu0 0
      %1091 = vperm.xlu0 %1090, %v989
      %v1092 = vpop.permute.xlu0 %1091
      %1095 = vset.pattern.permute.xlu0 0
      %1096 = vperm.xlu0 %1095, %v990
      %v1097 = vpop.permute.xlu0 %1096
      %1100 = vset.pattern.permute.xlu0 0
      %1101 = vperm.xlu0 %1100, %v991
      %v1102 = vpop.permute.xlu0 %1101
      %1105 = vset.pattern.permute.xlu0 0
      %1106 = vperm.xlu0 %1105, %v992
      %v1107 = vpop.permute.xlu0 %1106
      %1110 = vset.pattern.permute.xlu0 0
      %1111 = vperm.xlu0 %1110, %v993
      %v1112 = vpop.permute.xlu0 %1111
      %1115 = vset.pattern.permute.xlu0 0
      %1116 = vperm.xlu0 %1115, %v994
      %v1117 = vpop.permute.xlu0 %1116
      %1120 = vset.pattern.permute.xlu0 0
      %1121 = vperm.xlu0 %1120, %v995
      %v1122 = vpop.permute.xlu0 %1121
      %1125 = vset.pattern.permute.xlu0 0
      %1126 = vperm.xlu0 %1125, %v996
      %v1127 = vpop.permute.xlu0 %1126
      %1130 = vset.pattern.permute.xlu0 0
      %1131 = vperm.xlu0 %1130, %v997
      %v1132 = vpop.permute.xlu0 %1131
      %1135 = vset.pattern.permute.xlu0 0
      %1136 = vperm.xlu0 %1135, %v998
      %v1137 = vpop.permute.xlu0 %1136
      %1140 = vset.pattern.permute.xlu0 0
      %1141 = vperm.xlu0 %1140, %v999
      %v1142 = vpop.permute.xlu0 %1141
      %1145 = vset.pattern.permute.xlu0 0
      %1146 = vperm.xlu0 %1145, %v1000
      %v1147 = vpop.permute.xlu0 %1146
      %1150 = vset.pattern.permute.xlu0 0
      %1151 = vperm.xlu0 %1150, %v1001
      %v1152 = vpop.permute.xlu0 %1151
      %1155 = vset.pattern.permute.xlu0 0
      %1156 = vperm.xlu0 %1155, %v1002
      %v1157 = vpop.permute.xlu0 %1156
      %1160 = vset.pattern.permute.xlu0 0
      %1161 = vperm.xlu0 %1160, %v1003
      %v1162 = vpop.permute.xlu0 %1161
      %v1164 = vmul.f32 %v810, %v1007
      %v1165 = vmul.f32 %v811, %v1012
      %v1166 = vmul.f32 %v812, %v1017
      %v1167 = vmul.f32 %v813, %v1022
      %v1168 = vmul.f32 %v814, %v1027
      %v1169 = vmul.f32 %v815, %v1032
      %v1170 = vmul.f32 %v816, %v1037
      %v1171 = vmul.f32 %v817, %v1042
      %v1172 = vmul.f32 %v818, %v1047
      %v1173 = vmul.f32 %v819, %v1052
      %v1174 = vmul.f32 %v820, %v1057
      %v1175 = vmul.f32 %v821, %v1062
      %v1176 = vmul.f32 %v822, %v1067
      %v1177 = vmul.f32 %v823, %v1072
      %v1178 = vmul.f32 %v824, %v1077
      %v1179 = vmul.f32 %v825, %v1082
      %v1180 = vmul.f32 %v826, %v1087
      %v1181 = vmul.f32 %v827, %v1092
      %v1182 = vmul.f32 %v828, %v1097
      %v1183 = vmul.f32 %v829, %v1102
      %v1184 = vmul.f32 %v830, %v1107
      %v1185 = vmul.f32 %v831, %v1112
      %v1186 = vmul.f32 %v832, %v1117
      %v1187 = vmul.f32 %v833, %v1122
      %v1188 = vmul.f32 %v834, %v1127
      %v1189 = vmul.f32 %v835, %v1132
      %v1190 = vmul.f32 %v836, %v1137
      %v1191 = vmul.f32 %v837, %v1142
      %v1192 = vmul.f32 %v838, %v1147
      %v1193 = vmul.f32 %v839, %v1152
      %v1194 = vmul.f32 %v840, %v1157
      %v1195 = vmul.f32 %v841, %v1162
      %1196 = vst [vmem:[#allocation13] sm:$0xff] %v1164
      %1197 = vst [vmem:[#allocation13 + $0x8] sm:$0xff] %v1165
      %1198 = vst [vmem:[#allocation13 + $0x10] sm:$0xff] %v1166
      %1199 = vst [vmem:[#allocation13 + $0x18] sm:$0xff] %v1167
      %1200 = vst [vmem:[#allocation13 + $0x20] sm:$0xff] %v1168
      %1201 = vst [vmem:[#allocation13 + $0x28] sm:$0xff] %v1169
      %1202 = vst [vmem:[#allocation13 + $0x30] sm:$0xff] %v1170
      %1203 = vst [vmem:[#allocation13 + $0x38] sm:$0xff] %v1171
      %1204 = vst [vmem:[#allocation13 + $0x40] sm:$0xff] %v1172
      %1205 = vst [vmem:[#allocation13 + $0x48] sm:$0xff] %v1173
      %1206 = vst [vmem:[#allocation13 + $0x50] sm:$0xff] %v1174
      %1207 = vst [vmem:[#allocation13 + $0x58] sm:$0xff] %v1175
      %1208 = vst [vmem:[#allocation13 + $0x60] sm:$0xff] %v1176
      %1209 = vst [vmem:[#allocation13 + $0x68] sm:$0xff] %v1177
      %1210 = vst [vmem:[#allocation13 + $0x70] sm:$0xff] %v1178
      %1211 = vst [vmem:[#allocation13 + $0x78] sm:$0xff] %v1179
      %1212 = vst [vmem:[#allocation13 + $0x80] sm:$0xff] %v1180
      %1213 = vst [vmem:[#allocation13 + $0x88] sm:$0xff] %v1181
      %1214 = vst [vmem:[#allocation13 + $0x90] sm:$0xff] %v1182
      %1215 = vst [vmem:[#allocation13 + $0x98] sm:$0xff] %v1183
      %1216 = vst [vmem:[#allocation13 + $0xa0] sm:$0xff] %v1184
      %1217 = vst [vmem:[#allocation13 + $0xa8] sm:$0xff] %v1185
      %1218 = vst [vmem:[#allocation13 + $0xb0] sm:$0xff] %v1186
      %1219 = vst [vmem:[#allocation13 + $0xb8] sm:$0xff] %v1187
      %1220 = vst [vmem:[#allocation13 + $0xc0] sm:$0xff] %v1188
      %1221 = vst [vmem:[#allocation13 + $0xc8] sm:$0xff] %v1189
      %1222 = vst [vmem:[#allocation13 + $0xd0] sm:$0xff] %v1190
      %1223 = vst [vmem:[#allocation13 + $0xd8] sm:$0xff] %v1191
      %1224 = vst [vmem:[#allocation13 + $0xe0] sm:$0xff] %v1192
      %1225 = vst [vmem:[#allocation13 + $0xe8] sm:$0xff] %v1193
      %1226 = vst [vmem:[#allocation13 + $0xf0] sm:$0xff] %v1194
      %1227 = vst [vmem:[#allocation13 + $0xf8] sm:$0xff] %v1195
    $region53: #{model_forward.2} parent=1 // pred_fallthru
      _
    // Predicated region
    $region54: #{model_forward.2} parent=1 // pred_check
      _
    $region55: #{model_forward.2} parent=1 // pred_check_branch
      %1229 = sbr.rel (0) target = $region57
    $region56: #{model_forward.2} parent=1 // pred_region
      %s1231 = ssub.s32 4096, 4096
      %1232 = vsyncadd [#allocation6], %s1231
      %s1233 = sshll.u32 [#allocation13], 4
      %s1234 = int_to_ptr.vmem [resolvable:$true] %s1233
      %1239 = dma.vmem_to_hbm [thread:$0]  %s1234, 4096, %s6, [#allocation6], 128, 128, 8
    $region57: #{model_forward.2} parent=1 // pred_fallthru
      _
    // Predicated region
    $region58: #{model_forward.2} parent=1 // pred_check
      _
    $region59: #{model_forward.2} parent=1 // pred_check_branch
      %1241 = sbr.rel (0) target = $region61
    $region60: #{model_forward.2} parent=1 // pred_region
      %s1243 = ssub.s32 4096, 4096
      %1244 = vsyncadd [#allocation15], %s1243
      %s1245 = sshll.u32 [#allocation14], 4
      %s1246 = int_to_ptr.vmem [resolvable:$true] %s1245
      %1251 = dma.vmem_to_hbm [thread:$0]  %s1246, 4096, %s7, [#allocation15], 128, 128, 8
    $region61: #{model_forward.2} parent=1 // pred_fallthru
      _
    // Predicated region
    $region62: #{model_forward.2} parent=1 // pred_check
      _
    $region63: #{model_forward.2} parent=1 // pred_check_branch
      %1253 = sbr.rel (0) target = $region65
    $region64: #{model_forward.2} parent=1 // pred_region
      %1254 = dma.done [#allocation6], 4096
    $region65: #{model_forward.2} parent=1 // pred_fallthru
      _
    // Predicated region
    $region66: #{model_forward.2} parent=1 // pred_check
      _
    $region67: #{model_forward.2} parent=1 // pred_check_branch
      %1256 = sbr.rel (0) target = $region69
    $region68: #{model_forward.2} parent=1 // pred_region
      %1257 = dma.done [#allocation15], 4096
    $region69: #{model_forward.2} parent=1 // pred_fallthru
      _
    %1258 = vsyncpa [#allocation5], 1
    %1259 = vsyncpa [#allocation8], 1
    %1260 = vsyncpa [#allocation11], 1
    %1261 = vsyncpa [#allocation6], 1
    %1262 = vsyncpa [#allocation15], 1

</llo_original>
